<compile_context>
chip_gen: v7x
topology: tpu7x:2x2x1
jax: 0.10.0
libtpu: 0.0.40
codegen_flags: <defaults>
</compile_context>

<pallas_src>
import functools

import jax
import jax.numpy as jnp
from jax.experimental import pallas as pl
from jax.experimental.pallas import tpu as pltpu


def _dann_domain_classifier_kernel(x_ref, w_ref, b_ref, o_ref):
    # x_ref: (TB, F) VMEM tile (caller's native dtype)
    # w_ref: (1, F)  VMEM, resident across the whole grid
    # b_ref: (1,)    SMEM scalar
    # o_ref: (TB, 1) VMEM output tile
    x = x_ref[...].astype(jnp.float32)   # cast after the VMEM load (VPU slack, no HBM cost)
    w = w_ref[...].astype(jnp.float32)   # (1, F) -> broadcasts over the batch tile

    # Linear(15, 1): elementwise multiply (VPU) + cross-lane reduce (XLU), exact f32.
    z = jnp.sum(x * w, axis=-1, keepdims=True) + b_ref[0]          # (TB, 1)

    # Sigmoid written explicitly: exp lands on the EUP, reciprocal is exact
    # (approx=True would use the EUP vrcp at ~1e-4 relative error if acceptable).
    o_ref[...] = pl.reciprocal(1.0 + jnp.exp(-z), approx=False)


def _round_up(n: int, m: int) -> int:
    return ((n + m - 1) // m) * m


@functools.partial(jax.jit, static_argnames=("block_rows",))
def dann_domain_classifier(x, weight, bias, alpha, *, block_rows=4096):
    """Forward pass of DANNDomainClassifier: Sigmoid(Linear(15, 1)(x)).

    Args:
      x:      (B, 15) features (any float dtype; compute is f32 inside the kernel).
      weight: (1, 15) nn.Linear weight (out_features, in_features).
      bias:   (1,)    nn.Linear bias.
      alpha:  gradient-reversal lambda; identity in the forward pass.
              # TODO(synk): training parity needs a jax.custom_vjp that scales the
              # incoming cotangent of x by -alpha in the backward pass.
      block_rows: batch-tile size for the pipelined grid.

    Returns:
      (B, 1) float32 domain probabilities.
    """
    del alpha  # forward is identity w.r.t. alpha
    B, F = x.shape
    bias_s = bias.reshape((1,)).astype(jnp.float32)   # scalar -> SMEM

    tb = min(block_rows, _round_up(B, 8))             # sublane-aligned batch tile
    grid = (pl.cdiv(B, tb),)

    return pl.pallas_call(
        _dann_domain_classifier_kernel,
        out_shape=jax.ShapeDtypeStruct((B, 1), jnp.float32),
        grid=grid,
        in_specs=[
            pl.BlockSpec((tb, F), lambda i: (i, 0)),            # x: pipelined batch tiles
            pl.BlockSpec((1, F), lambda i: (0, 0)),             # weight: resident in VMEM
            pl.BlockSpec(memory_space=pltpu.MemorySpace.SMEM),  # bias: scalar in SMEM
        ],
        out_specs=pl.BlockSpec((tb, 1), lambda i: (i, 0)),
        compiler_params=pltpu.CompilerParams(
            dimension_semantics=("parallel",),                  # megacore-shardable batch axis
        ),
    )(x, weight, bias_s)


def _reference(x, weight, bias, alpha):
    del alpha
    x32 = x.astype(jnp.float32)
    return jax.nn.sigmoid(
        jnp.sum(x32 * weight.astype(jnp.float32), axis=-1, keepdims=True)
        + bias.astype(jnp.float32)[None, :]
    )


if __name__ == "__main__":
    key = jax.random.PRNGKey(0)
    kx, kw, kb, kx2 = jax.random.split(key, 4)

    F = 15  # fixed by the module (nn.Linear(15, 1))
    bound = 1.0 / (F ** 0.5)
    weight = jax.random.uniform(kw, (1, F), jnp.float32, -bound, bound)
    bias = jax.random.uniform(kb, (1,), jnp.float32, -bound, bound)
    alpha = 0.5

    # Small primary case (matches the toy intertwined-moons setup).
    B = 8
    x = jax.random.normal(kx, (B, F), jnp.float32)
    out = jax.block_until_ready(dann_domain_classifier(x, weight, bias, alpha))
    ref = _reference(x, weight, bias, alpha)
    assert out.shape == (B, 1)
    assert jnp.allclose(out, ref, atol=1e-5, rtol=1e-5)

    # Exercise the batch grid: multiple tiles plus a partial final tile.
    B2 = 300
    x2 = jax.random.normal(kx2, (B2, F), jnp.float32)
    out2 = jax.block_until_ready(
        dann_domain_classifier(x2, weight, bias, alpha, block_rows=128))
    ref2 = _reference(x2, weight, bias, alpha)
    assert out2.shape == (B2, 1)
    assert jnp.allclose(out2, ref2, atol=1e-5, rtol=1e-5)

    print("KERNEL_OK")
</pallas_src>

<mosaic_0001>
module attributes {stable_mosaic.version = 11 : i64} {
  func.func @_dann_domain_classifier_kernel(%arg0: i32, %arg1: memref<8x15xf32, #tpu.memory_space<vmem>>, %arg2: memref<1x15xf32, #tpu.memory_space<vmem>>, %arg3: memref<1xf32, #tpu.memory_space<smem>>, %arg4: memref<8x1xf32, #tpu.memory_space<vmem>>) attributes {dimension_semantics = [#tpu.dimension_semantics<parallel>], iteration_bounds = array<i64: 1>, scalar_prefetch = 0 : i64, scratch_operands = 0 : i64, tpu.core_type = #tpu.core_type<tc>, window_params = [{transform_indices = @transform_0, window_bounds = array<i64: 8, 15>}, {pipeline_mode = #tpu.pipeline_mode<synchronous>, transform_indices = @transform_1, window_bounds = array<i64: 1, 15>}, {transform_indices = @transform_2, window_bounds = array<i64: 1>}, {transform_indices = @transform_3, window_bounds = array<i64: 8, 1>}]} {
    %c0 = arith.constant 0 : index
    %c0_0 = arith.constant 0 : index
    %0 = vector.load %arg1[%c0, %c0_0] : memref<8x15xf32, #tpu.memory_space<vmem>>, vector<8x15xf32>
    %c0_1 = arith.constant 0 : index
    %c0_2 = arith.constant 0 : index
    %1 = vector.load %arg2[%c0_1, %c0_2] : memref<1x15xf32, #tpu.memory_space<vmem>>, vector<1x15xf32>
    %2 = vector.broadcast %1 : vector<1x15xf32> to vector<8x15xf32>
    %3 = arith.mulf %0, %2 : vector<8x15xf32>
    %cst = arith.constant dense<0.000000e+00> : vector<8xf32>
    %4 = vector.multi_reduction <add>, %3, %cst [1] : vector<8x15xf32> to vector<8xf32>
    %5 = vector.shape_cast %4 : vector<8xf32> to vector<8x1xf32>
    %c0_3 = arith.constant 0 : index
    %6 = memref.load %arg3[%c0_3] : memref<1xf32, #tpu.memory_space<smem>>
    %7 = vector.broadcast %6 : f32 to vector<8x1xf32>
    %8 = arith.addf %5, %7 : vector<8x1xf32>
    %cst_4 = arith.constant 0.000000e+00 : f32
    %9 = vector.broadcast %cst_4 : f32 to vector<8x1xf32>
    %10 = arith.subf %9, %8 : vector<8x1xf32>
    %11 = math.exp %10 : vector<8x1xf32>
    %cst_5 = arith.constant 1.000000e+00 : f32
    %12 = vector.broadcast %cst_5 : f32 to vector<8x1xf32>
    %13 = arith.addf %12, %11 : vector<8x1xf32>
    %14 = tpu.reciprocal %13 : vector<8x1xf32> -> vector<8x1xf32>
    %c0_6 = arith.constant 0 : index
    %c0_7 = arith.constant 0 : index
    %15 = vector.load %arg4[%c0_6, %c0_7] : memref<8x1xf32, #tpu.memory_space<vmem>>, vector<8x1xf32>
    tpu.vector_store %arg4[%c0_6, %c0_7], %14 {strides = array<i32>} : memref<8x1xf32, #tpu.memory_space<vmem>>, vector<8x1xf32>,
    return
  }
  func.func @transform_0(%arg0: i32) -> (i32, i32) {
    %c0_i32 = arith.constant 0 : i32
    %c0_i32_0 = arith.constant 0 : i32
    return %arg0, %c0_i32 : i32, i32
  }
  func.func @transform_1(%arg0: i32) -> (i32, i32) {
    %c0_i32 = arith.constant 0 : i32
    %c0_i32_0 = arith.constant 0 : i32
    %c0_i32_1 = arith.constant 0 : i32
    return %c0_i32, %c0_i32_0 : i32, i32
  }
  func.func @transform_2(%arg0: i32) -> i32 {
    %c0_i32 = arith.constant 0 : i32
    %c0_i32_0 = arith.constant 0 : i32
    return %c0_i32 : i32
  }
  func.func @transform_3(%arg0: i32) -> (i32, i32) {
    %c0_i32 = arith.constant 0 : i32
    %c0_i32_0 = arith.constant 0 : i32
    return %arg0, %c0_i32 : i32, i32
  }
}

</mosaic_0001>

<llo_original>
// kernel: dann_domain_classifier.1
$region0: #{dann_domain_classifier.1}
  #allocation0 [shape = 'u32[]', space=smem, size = 0x4, offset = 0x4, fixed_abs, tag = 'smem constant byte address 0x4 - core index']
  #allocation1 [shape = 'u32[144,128]{1,0:T(1,128)}', space=vmem, size = 0x12000, scoped, tag = 'internal scratch']
  #allocation2 [shape = 'f32[1]{0:T(128)S(6)}', space=smem, size = 0x200, scoped, tag = 'scoped memory for dann_domain_classifier.1']
  %s0 = inlined_call_operand.hbm [shape: f32[8,15], index: 0, kind: input, shape index: {}]
  %s1 = inlined_call_operand.vmem [shape: f32[1,15], index: 1, kind: input, shape index: {}]
  %s2 = inlined_call_operand.<no memory space> [shape: f32[1], index: 2, kind: input, shape index: {}]
  %s3 = inlined_call_operand.vmem [shape: f32[8,1], index: 3, kind: output, shape index: {}]
  %s4 = sld [smem:[#allocation0]]
  $region26: #{dann_domain_classifier.1} parent=0
    _
  %s6 = ssub.s32 1, %s4
  %s7 = scalar_select 0, %s6, %s4
  %8 = sst [smem:[#allocation2]] %s2
  $region1: #{dann_domain_classifier.1} parent=0
    #allocation3 [shape = 'u8[4096]{0}', space=vmem, size = 0x1000, scoped, tag = 'input window, operand 0, single buffered']
    #allocation4 [shape = 's32[1]{0}', space=sflag, size = 0x4, scoped, tag = 'scoped memory for dann_domain_classifier.1']
    %9 = vsyncpa [#allocation4], 0
    // Predicated region
    $region2: #{dann_domain_classifier.1} parent=1 // pred_check
      _
    $region3: #{dann_domain_classifier.1} parent=1 // pred_check_branch
      %11 = sbr.rel (0) target = $region5
    $region4: #{dann_domain_classifier.1} parent=1 // pred_region
      %s13 = ssub.s32 128, 128
      %14 = vsyncadd [#allocation4], %s13
      %s16 = sshll.u32 [#allocation3], 4
      %s17 = int_to_ptr.vmem [resolvable:$true] %s16
      %19 = dma.hbm_to_vmem [thread:$0]  %s0, 128, %s17, [#allocation4]
    $region5: #{dann_domain_classifier.1} parent=1 // pred_fallthru
      _
    // Predicated region
    $region6: #{dann_domain_classifier.1} parent=1 // pred_check
      _
    $region7: #{dann_domain_classifier.1} parent=1 // pred_check_branch
      %21 = sbr.rel (0) target = $region9
    $region8: #{dann_domain_classifier.1} parent=1 // pred_region
      _
    $region9: #{dann_domain_classifier.1} parent=1 // pred_fallthru
      _
    // Predicated region
    $region10: #{dann_domain_classifier.1} parent=1 // pred_check
      _
    $region11: #{dann_domain_classifier.1} parent=1 // pred_check_branch
      %23 = sbr.rel (0) target = $region13
    $region12: #{dann_domain_classifier.1} parent=1 // pred_region
      _
    $region13: #{dann_domain_classifier.1} parent=1 // pred_fallthru
      _
    // Predicated region
    $region14: #{dann_domain_classifier.1} parent=1 // pred_check
      _
    $region15: #{dann_domain_classifier.1} parent=1 // pred_check_branch
      %25 = sbr.rel (0) target = $region17
    $region16: #{dann_domain_classifier.1} parent=1 // pred_region
      %26 = dma.done [#allocation4], 128
    $region17: #{dann_domain_classifier.1} parent=1 // pred_fallthru
      _
    %v27 = vld [vmem:[#allocation3] sm:$0xff]
    %v28 = vld [vmem:[%s1] sm:$0x1]
    %v30 = vlaneseq
    %v31 = vshrl.u32 %v30, 7
    %v32 = vsub.s32 0, %v31
    %v33 = vrot.slane %v28, %v32
    %v35 = vmul.f32 %v27, %v33
    %vm36 = vcmask 121856
    %v37 = vsel %vm36, %v35, 0.0
    %38 = vadd.xlane.f32.xlu0 %v37
    %v39 = vpop.xlane.xlu0 %38
    %s40 = sld [smem:[#allocation2]]
    %v41 = vstv %s40
    %v42 = vadd.f32 %v39, %v41
    %v43 = vsub.f32 0.0, %v42
    %v44 = vmul.f32 %v43, 1.442695
    %v45 = vpow.pop %v44
    %v46 = vadd.f32 %v45, 1.0
    %v47 = vrcp.pop %v46
    %vm48 = vcmask 7168
    %49 = vst.msk [vmem:[%s3] sm:$0xff] %vm48, %v47
    // Predicated region
    $region18: #{dann_domain_classifier.1} parent=1 // pred_check
      _
    $region19: #{dann_domain_classifier.1} parent=1 // pred_check_branch
      %51 = sbr.rel (0) target = $region21
    $region20: #{dann_domain_classifier.1} parent=1 // pred_region
      _
    $region21: #{dann_domain_classifier.1} parent=1 // pred_fallthru
      _
    // Predicated region
    $region22: #{dann_domain_classifier.1} parent=1 // pred_check
      _
    $region23: #{dann_domain_classifier.1} parent=1 // pred_check_branch
      %53 = sbr.rel (0) target = $region25
    $region24: #{dann_domain_classifier.1} parent=1 // pred_region
      _
    $region25: #{dann_domain_classifier.1} parent=1 // pred_fallthru
      _
    %54 = vsyncpa [#allocation4], 1

</llo_original>
